<compile_context>
chip_gen: v7x
topology: tpu7x:2x2x1
jax: 0.10.0
libtpu: 0.0.40
codegen_flags: <defaults>
</compile_context>

<pallas_src>
import functools

import jax
import jax.numpy as jnp
from jax.experimental import pallas as pl
from jax.experimental.pallas import tpu as pltpu


def _focal_loss_kernel(x_ref, t_ref, out_ref, *, alpha, gamma, n_rows, tile_n,
                       mask_rows):
    x = x_ref[...].astype(jnp.float32)     # (tile_n, C)
    t = t_ref[...].astype(jnp.float32)     # (tile_n, C)

    # Numerically stable log-sum-exp along the class (lane) axis.
    m = jnp.max(x, axis=-1, keepdims=True)                          # (tile_n, 1)
    lse = jnp.log(jnp.sum(jnp.exp(x - m), axis=-1, keepdims=True))  # (tile_n, 1)

    # ce = -sum((x - m - lse) * t, -1) = (m + lse) * sum(t) - sum(x * t)
    sum_t = jnp.sum(t, axis=-1, keepdims=True)                      # (tile_n, 1)
    sum_xt = jnp.sum(x * t, axis=-1, keepdims=True)                 # (tile_n, 1)
    ce = (m + lse) * sum_t - sum_xt                                 # (tile_n, 1)

    # Focal re-weighting: alpha * (1 - exp(-ce))**gamma * ce.
    pt = jnp.exp(-ce)
    w = jnp.maximum(1.0 - pt, 0.0)   # pt can round slightly above 1.0
    if gamma == 2.0:                 # integer-gamma fast path (no EUP power)
        weight = w * w
    elif gamma == 1.0:
        weight = w
    elif gamma == 0.0:
        weight = jnp.ones_like(w)
    else:
        weight = w ** gamma          # general (non-integer) gamma
    focal = alpha * weight * ce                                     # (tile_n, 1)

    # Mask rows past the end of the batch (only compiled in when the batch is
    # not a multiple of tile_n).  Keep this a select, not a multiply, so any
    # Inf/NaN produced by garbage rows in the padded last block is dropped.
    if mask_rows:
        row = (pl.program_id(0) * tile_n
               + jax.lax.broadcasted_iota(jnp.int32, focal.shape, 0))
        focal = jnp.where(row < n_rows, focal, 0.0)

    # Per-tile partial sum, written lane-dense into element [0, 0, 0] of this
    # tile's (1, 8, 128) output block (other elements zeroed).  No carried
    # accumulator → the grid axis can be sharded across TensorCores on v7x.
    partial = jnp.sum(focal)
    sub = jax.lax.broadcasted_iota(jnp.int32, (1, 8, 128), 1)
    lane = jax.lax.broadcasted_iota(jnp.int32, (1, 8, 128), 2)
    out_ref[...] = jnp.where((sub == 0) & (lane == 0), partial, 0.0)


def _round_up(v, m):
    return ((v + m - 1) // m) * m


def _vmem_capacity_bytes():
    """Physical VMEM of the current TPU generation (conservative fallback)."""
    try:
        info = pltpu.get_tpu_info()
        cap = getattr(info, "vmem_capacity_bytes", None)
        if cap:
            return int(cap)
    except Exception:
        pass
    return 64 * 1024 * 1024   # v7x per-TensorCore size (smallest of v5e/v6e/v7x)


def focal_loss(x, target, alpha=1.0, gamma=2.0):
    """Pallas implementation of FocalLoss(alpha, gamma)(x, target).

    x:      (N, C) logits (f32 or bf16)
    target: (N, C) dense (one-hot / soft) targets
    returns scalar float32 loss (mean over rows).
    """
    assert x.shape == target.shape and x.ndim == 2
    n, c = x.shape

    itemsize = jnp.dtype(x.dtype).itemsize
    row_align = 16 if itemsize == 2 else 8     # bf16 packs 16 rows per sublane pair

    # Per-generation kernel VMEM budget:
    #   v5e/v6e (128 MiB physical) -> 48 MiB, v7x (64 MiB per TC) -> 24 MiB.
    vmem_cap = _vmem_capacity_bytes()
    kernel_vmem_budget = min(vmem_cap * 3 // 8, 48 * 1024 * 1024)

    # Bytes of VMEM needed per tile row:
    #   inputs:          2 arrays x 2 pipeline buffers x C x itemsize
    #   (tile_n,C) temps: ~3 live f32 temporaries (casts, exp(x-m), x*t)
    #   (tile_n,1) temps: ~6, each padded to 128 lanes (= 512 B f32)
    bytes_per_row = 2 * 2 * c * itemsize + 3 * c * 4 + 6 * 512
    usable = int(kernel_vmem_budget * 0.7)               # 30% headroom
    rows_from_vmem = usable // bytes_per_row
    rows_from_block = (4 * 1024 * 1024) // (c * itemsize)  # ~4 MiB per input block
    tile_n = min(rows_from_vmem, rows_from_block, _round_up(n, row_align))
    tile_n = max(row_align, (tile_n // row_align) * row_align)

    grid = pl.cdiv(n, tile_n)
    mask_rows = (n % tile_n) != 0            # skip the mask when tiles divide N

    kernel = functools.partial(
        _focal_loss_kernel, alpha=float(alpha), gamma=float(gamma),
        n_rows=n, tile_n=tile_n, mask_rows=mask_rows)

    out = pl.pallas_call(
        kernel,
        out_shape=jax.ShapeDtypeStruct((grid, 8, 128), jnp.float32),
        grid=(grid,),
        in_specs=[
            pl.BlockSpec((tile_n, c), lambda i: (i, 0)),
            pl.BlockSpec((tile_n, c), lambda i: (i, 0)),
        ],
        out_specs=pl.BlockSpec((1, 8, 128), lambda i: (i, 0, 0)),
        compiler_params=pltpu.CompilerParams(
            # Independent per-tile partial sums -> grid axis is parallel, so
            # v7x shards it across both TensorCores (neutral on v5e/v6e).
            dimension_semantics=("parallel",),
            vmem_limit_bytes=int(kernel_vmem_budget),
        ),
    )(x, target)

    # Final reduction over the tiny (grid, 8, 128) partial-sum buffer.
    return jnp.sum(out) / n


def _reference_focal_loss(x, target, alpha=1.0, gamma=2.0):
    """Plain-JAX reference mirroring the PyTorch module."""
    x = x.astype(jnp.float32)
    target = target.astype(jnp.float32)
    logprobs = jax.nn.log_softmax(x, axis=-1)
    ce = jnp.sum(-logprobs * target, axis=-1)
    pt = jnp.exp(-ce)
    loss = alpha * (1.0 - pt) ** gamma * ce
    return jnp.mean(loss)


if __name__ == "__main__":
    # Deterministic synthetic inputs: batch=8 samples, 32 classes.
    key = jax.random.PRNGKey(0)
    kx, kt = jax.random.split(key)

    N, C = 8, 32
    x = jax.random.normal(kx, (N, C), dtype=jnp.float32)
    labels = jax.random.randint(kt, (N,), 0, C)
    target = jax.nn.one_hot(labels, C, dtype=jnp.float32)

    # FocalLoss default hyperparameters from __init__: alpha=1, gamma=2.
    loss = focal_loss(x, target, alpha=1.0, gamma=2.0)
    loss = jax.block_until_ready(loss)

    ref = _reference_focal_loss(x, target, alpha=1.0, gamma=2.0)
    assert jnp.allclose(loss, ref, atol=1e-5, rtol=1e-5), (loss, ref)

    print("KERNEL_OK")
</pallas_src>

<mosaic_0001>
module attributes {stable_mosaic.version = 11 : i64} {
  func.func @_focal_loss_kernel(%arg0: i32, %arg1: memref<8x32xf32, #tpu.memory_space<vmem>>, %arg2: memref<8x32xf32, #tpu.memory_space<vmem>>, %arg3: memref<1x8x128xf32, #tpu.memory_space<vmem>>) attributes {dimension_semantics = [#tpu.dimension_semantics<parallel>], iteration_bounds = array<i64: 1>, scalar_prefetch = 0 : i64, scratch_operands = 0 : i64, tpu.core_type = #tpu.core_type<tc>, window_params = [{transform_indices = @transform_0, window_bounds = array<i64: 8, 32>}, {transform_indices = @transform_1, window_bounds = array<i64: 8, 32>}, {transform_indices = @transform_2, window_bounds = array<i64: 1, 8, 128>}]} {
    %c0 = arith.constant 0 : index
    %c0_0 = arith.constant 0 : index
    %0 = vector.load %arg1[%c0, %c0_0] : memref<8x32xf32, #tpu.memory_space<vmem>>, vector<8x32xf32>
    %c0_1 = arith.constant 0 : index
    %c0_2 = arith.constant 0 : index
    %1 = vector.load %arg2[%c0_1, %c0_2] : memref<8x32xf32, #tpu.memory_space<vmem>>, vector<8x32xf32>
    %cst = arith.constant dense<0xFF800000> : vector<8xf32>
    %2 = vector.multi_reduction <maximumf>, %0, %cst [1] : vector<8x32xf32> to vector<8xf32>
    %3 = vector.shape_cast %2 : vector<8xf32> to vector<8x1xf32>
    %4 = vector.broadcast %3 : vector<8x1xf32> to vector<8x32xf32>
    %5 = arith.subf %0, %4 : vector<8x32xf32>
    %6 = math.exp %5 : vector<8x32xf32>
    %cst_3 = arith.constant dense<0.000000e+00> : vector<8xf32>
    %7 = vector.multi_reduction <add>, %6, %cst_3 [1] : vector<8x32xf32> to vector<8xf32>
    %8 = vector.shape_cast %7 : vector<8xf32> to vector<8x1xf32>
    %9 = math.log %8 : vector<8x1xf32>
    %cst_4 = arith.constant dense<0.000000e+00> : vector<8xf32>
    %10 = vector.multi_reduction <add>, %1, %cst_4 [1] : vector<8x32xf32> to vector<8xf32>
    %11 = vector.shape_cast %10 : vector<8xf32> to vector<8x1xf32>
    %12 = arith.mulf %0, %1 : vector<8x32xf32>
    %cst_5 = arith.constant dense<0.000000e+00> : vector<8xf32>
    %13 = vector.multi_reduction <add>, %12, %cst_5 [1] : vector<8x32xf32> to vector<8xf32>
    %14 = vector.shape_cast %13 : vector<8xf32> to vector<8x1xf32>
    %15 = arith.addf %3, %9 : vector<8x1xf32>
    %16 = arith.mulf %15, %11 : vector<8x1xf32>
    %17 = arith.subf %16, %14 : vector<8x1xf32>
    %cst_6 = arith.constant 0.000000e+00 : f32
    %18 = vector.broadcast %cst_6 : f32 to vector<8x1xf32>
    %19 = arith.subf %18, %17 : vector<8x1xf32>
    %20 = math.exp %19 : vector<8x1xf32>
    %cst_7 = arith.constant 1.000000e+00 : f32
    %21 = vector.broadcast %cst_7 : f32 to vector<8x1xf32>
    %22 = arith.subf %21, %20 : vector<8x1xf32>
    %cst_8 = arith.constant 0.000000e+00 : f32
    %23 = vector.broadcast %cst_8 : f32 to vector<8x1xf32>
    %24 = arith.maximumf %22, %23 : vector<8x1xf32>
    %25 = arith.mulf %24, %24 : vector<8x1xf32>
    %cst_9 = arith.constant 1.000000e+00 : f32
    %26 = vector.broadcast %cst_9 : f32 to vector<8x1xf32>
    %27 = arith.mulf %26, %25 : vector<8x1xf32>
    %28 = arith.mulf %27, %17 : vector<8x1xf32>
    %29 = vector.shape_cast %28 : vector<8x1xf32> to vector<1x8x1xf32>
    %cst_10 = arith.constant dense<0.000000e+00> : vector<1xf32>
    %30 = vector.multi_reduction <add>, %29, %cst_10 [1, 2] : vector<1x8x1xf32> to vector<1xf32>
    %31 = vector.shape_cast %30 : vector<1xf32> to vector<1x1x1xf32>
    %32 = vector.extract %31[0, 0, 0] : f32 from vector<1x1x1xf32>
    %33 = tpu.iota {dimensions = array<i32: 1>} : vector<1x8x128xi32>
    %34 = tpu.iota {dimensions = array<i32: 2>} : vector<1x8x128xi32>
    %c0_i32 = arith.constant 0 : i32
    %35 = vector.broadcast %c0_i32 : i32 to vector<1x8x128xi32>
    %36 = arith.cmpi eq, %33, %35 : vector<1x8x128xi32>
    %c0_i32_11 = arith.constant 0 : i32
    %37 = vector.broadcast %c0_i32_11 : i32 to vector<1x8x128xi32>
    %38 = arith.cmpi eq, %34, %37 : vector<1x8x128xi32>
    %39 = arith.andi %36, %38 : vector<1x8x128xi1>
    %cst_12 = arith.constant 0.000000e+00 : f32
    %40 = vector.broadcast %32 : f32 to vector<1x8x128xf32>
    %41 = vector.broadcast %cst_12 : f32 to vector<1x8x128xf32>
    %42 = arith.select %39, %40, %41 : vector<1x8x128xi1>, vector<1x8x128xf32>
    %c0_13 = arith.constant 0 : index
    %c0_14 = arith.constant 0 : index
    %c0_15 = arith.constant 0 : index
    %43 = vector.load %arg3[%c0_13, %c0_14, %c0_15] : memref<1x8x128xf32, #tpu.memory_space<vmem>>, vector<1x8x128xf32>
    tpu.vector_store %arg3[%c0_13, %c0_14, %c0_15], %42 {strides = array<i32>} : memref<1x8x128xf32, #tpu.memory_space<vmem>>, vector<1x8x128xf32>,
    return
  }
  func.func @transform_0(%arg0: i32) -> (i32, i32) {
    %c0_i32 = arith.constant 0 : i32
    %c0_i32_0 = arith.constant 0 : i32
    return %arg0, %c0_i32 : i32, i32
  }
  func.func @transform_1(%arg0: i32) -> (i32, i32) {
    %c0_i32 = arith.constant 0 : i32
    %c0_i32_0 = arith.constant 0 : i32
    return %arg0, %c0_i32 : i32, i32
  }
  func.func @transform_2(%arg0: i32) -> (i32, i32, i32) {
    %c0_i32 = arith.constant 0 : i32
    %c0_i32_0 = arith.constant 0 : i32
    %c0_i32_1 = arith.constant 0 : i32
    return %arg0, %c0_i32, %c0_i32_0 : i32, i32, i32
  }
}

</mosaic_0001>

<llo_original>
// kernel: tpu_custom_call.1
$region0: #{tpu_custom_call.1}
  #allocation0 [shape = 'u32[]', space=smem, size = 0x4, offset = 0x4, fixed_abs, tag = 'smem constant byte address 0x4 - core index']
  #allocation1 [shape = 'u32[144,128]{1,0:T(1,128)}', space=vmem, size = 0x12000, scoped, tag = 'internal scratch']
  %s0 = inlined_call_operand.hbm [shape: f32[8,32], index: 0, kind: input, shape index: {}]
  %s1 = inlined_call_operand.hbm [shape: f32[8,32], index: 1, kind: input, shape index: {}]
  %s2 = inlined_call_operand.hbm [shape: f32[1,8,128], index: 2, kind: output, shape index: {}]
  %s3 = sld [smem:[#allocation0]]
  $region26: #{tpu_custom_call.1} parent=0
    _
  %s5 = ssub.s32 1, %s3
  %s6 = scalar_select 0, %s5, %s3
  $region1: #{tpu_custom_call.1} parent=0
    #allocation2 [shape = 'u8[4096]{0}', space=vmem, size = 0x1000, scoped, tag = 'input window, operand 0, single buffered']
    #allocation3 [shape = 's32[1]{0}', space=sflag, size = 0x4, scoped, tag = 'scoped memory for tpu_custom_call.1']
    #allocation4 [shape = 's32[1]{0}', space=sflag, size = 0x4, scoped, tag = 'scoped memory for tpu_custom_call.1']
    #allocation5 [shape = 'u8[4096]{0}', space=vmem, size = 0x1000, scoped, tag = 'input window, operand 1, single buffered']
    #allocation6 [shape = 's32[1]{0}', space=sflag, size = 0x4, scoped, tag = 'scoped memory for tpu_custom_call.1']
    #allocation7 [shape = 'u8[4096]{0}', space=vmem, size = 0x1000, scoped, tag = 'output window, operand 0, single buffered']
    %7 = vsyncpa [#allocation3], 0
    %8 = vsyncpa [#allocation6], 0
    %9 = vsyncpa [#allocation4], 0
    // Predicated region
    $region2: #{tpu_custom_call.1} parent=1 // pred_check
      _
    $region3: #{tpu_custom_call.1} parent=1 // pred_check_branch
      %11 = sbr.rel (0) target = $region5
    $region4: #{tpu_custom_call.1} parent=1 // pred_region
      %s13 = ssub.s32 128, 128
      %14 = vsyncadd [#allocation3], %s13
      %s16 = sshll.u32 [#allocation2], 4
      %s17 = int_to_ptr.vmem [resolvable:$true] %s16
      %19 = dma.hbm_to_vmem [thread:$0]  %s0, 128, %s17, [#allocation3]
    $region5: #{tpu_custom_call.1} parent=1 // pred_fallthru
      _
    // Predicated region
    $region6: #{tpu_custom_call.1} parent=1 // pred_check
      _
    $region7: #{tpu_custom_call.1} parent=1 // pred_check_branch
      %21 = sbr.rel (0) target = $region9
    $region8: #{tpu_custom_call.1} parent=1 // pred_region
      %s23 = ssub.s32 128, 128
      %24 = vsyncadd [#allocation6], %s23
      %s26 = sshll.u32 [#allocation5], 4
      %s27 = int_to_ptr.vmem [resolvable:$true] %s26
      %29 = dma.hbm_to_vmem [thread:$0]  %s1, 128, %s27, [#allocation6]
    $region9: #{tpu_custom_call.1} parent=1 // pred_fallthru
      _
    // Predicated region
    $region10: #{tpu_custom_call.1} parent=1 // pred_check
      _
    $region11: #{tpu_custom_call.1} parent=1 // pred_check_branch
      %31 = sbr.rel (0) target = $region13
    $region12: #{tpu_custom_call.1} parent=1 // pred_region
      %32 = dma.done [#allocation3], 128
    $region13: #{tpu_custom_call.1} parent=1 // pred_fallthru
      _
    // Predicated region
    $region14: #{tpu_custom_call.1} parent=1 // pred_check
      _
    $region15: #{tpu_custom_call.1} parent=1 // pred_check_branch
      %34 = sbr.rel (0) target = $region17
    $region16: #{tpu_custom_call.1} parent=1 // pred_region
      %35 = dma.done [#allocation6], 128
    $region17: #{tpu_custom_call.1} parent=1 // pred_fallthru
      _
    %v36 = vld [vmem:[#allocation2] sm:$0xff]
    %v37 = vld [vmem:[#allocation5] sm:$0xff]
    %vm38 = vcmask 261120
    %v39 = vsel %vm38, %v36, -inf
    %40 = vmax.xlane.f32.xlu0 %v39
    %v41 = vpop.xlane.xlu0 %40
    %v42 = vsub.f32 %v36, %v41
    %v43 = vmul.f32 %v42, 1.442695
    %v44 = vpow.pop %v43
    %v45 = vsel %vm38, %v44, 0.0
    %46 = vadd.xlane.f32.xlu0 %v45
    %v47 = vpop.xlane.xlu0 %46
    %v48 = vlog2.pop %v47
    %v49 = vmul.f32 %v48, 0.6931472
    %v50 = vsel %vm38, %v37, 0.0
    %51 = vadd.xlane.f32.xlu0 %v50
    %v52 = vpop.xlane.xlu0 %51
    %v53 = vmul.f32 %v36, %v37
    %v54 = vsel %vm38, %v53, 0.0
    %55 = vadd.xlane.f32.xlu0 %v54
    %v56 = vpop.xlane.xlu0 %55
    %v57 = vadd.f32 %v41, %v49
    %v58 = vmul.f32 %v57, %v52
    %v59 = vsub.f32 %v58, %v56
    %v60 = vsub.f32 0.0, %v59
    %v61 = vmul.f32 %v60, 1.442695
    %v62 = vpow.pop %v61
    %v63 = vsub.f32 1.0, %v62
    %v64 = vmax.f32 %v63, 0.0
    %v65 = vmul.f32 %v64, %v64
    %v66 = vmul.f32 %v65, %v59
    %vm67 = vcmask 7168
    %v68 = vsel %vm67, %v66, 0.0
    %69 = vadd.xlane.f32.xlu0 %v68
    %v70 = vpop.xlane.xlu0 %69
    %v71 = vrot.slane %v70, 4
    %v72 = vadd.f32 %v70, %v71
    %v73 = vrot.slane %v72, 2
    %v74 = vadd.f32 %v72, %v73
    %v75 = vrot.slane %v74, 1
    %v76 = vadd.f32 %v74, %v75
    %s77 = vtos %v76
    %v78 = vlaneseq
    %v79 = vshrl.u32 %v78, 7
    %v80 = vlaneseq
    %v81 = vand.u32 %v80, 127
    %vm82 = vcmp.eq.s32.totalorder %v79, 0
    %vm83 = vcmp.eq.s32.totalorder %v81, 0
    %vm84 = vmand %vm82, %vm83
    %v85 = vstv %s77
    %v86 = vsel %vm84, %v85, 0.0
    %87 = vst [vmem:[#allocation7] sm:$0xff] %v86
    // Predicated region
    $region18: #{tpu_custom_call.1} parent=1 // pred_check
      _
    $region19: #{tpu_custom_call.1} parent=1 // pred_check_branch
      %89 = sbr.rel (0) target = $region21
    $region20: #{tpu_custom_call.1} parent=1 // pred_region
      %s91 = ssub.s32 128, 128
      %92 = vsyncadd [#allocation4], %s91
      %s94 = sshll.u32 [#allocation7], 4
      %s95 = int_to_ptr.vmem [resolvable:$true] %s94
      %97 = dma.vmem_to_hbm [thread:$0]  %s95, 128, %s2, [#allocation4]
    $region21: #{tpu_custom_call.1} parent=1 // pred_fallthru
      _
    // Predicated region
    $region22: #{tpu_custom_call.1} parent=1 // pred_check
      _
    $region23: #{tpu_custom_call.1} parent=1 // pred_check_branch
      %99 = sbr.rel (0) target = $region25
    $region24: #{tpu_custom_call.1} parent=1 // pred_region
      %100 = dma.done [#allocation4], 128
    $region25: #{tpu_custom_call.1} parent=1 // pred_fallthru
      _
    %101 = vsyncpa [#allocation3], 1
    %102 = vsyncpa [#allocation6], 1
    %103 = vsyncpa [#allocation4], 1

</llo_original>
